<compile_context>
chip_gen: v6e
topology: v6e:2x2x1
jax: 0.10.0
libtpu: 0.0.40
codegen_flags: <defaults>
</compile_context>

<pallas_src>
import functools

import jax
import jax.numpy as jnp
from jax.experimental import pallas as pl
from jax.experimental.pallas import tpu as pltpu


# ----------------------------------------------------------------------------
# Fused Pallas kernel: grid = (num_tensors P, nnz blocks)
# ----------------------------------------------------------------------------
def _cntf_fused_kernel(nblk_ref, scale_ref, bias_ref, packed_ref, fac_ref,
                       out_ref, *, rank, t_max, n_l):
    p = pl.program_id(0)   # which sparse tensor
    k = pl.program_id(1)   # which nnz block

    # Initialize this tensor's resident partial with the hoisted sum_M term.
    @pl.when(k == 0)
    def _():
        out_ref[...] = jnp.full((1, 1), bias_ref[p], dtype=jnp.float32)

    # Skip blocks that are pure padding for this tensor.
    @pl.when(k < nblk_ref[p])
    def _():
        pk = packed_ref[...]                        # (8, blk) int32, one DMA
        blk = pk.shape[1]

        idx_t = pk[0:1, :]                          # (1, blk) W-row indices
        idx_l = pk[1:2, :] + t_max                  # offset into Ul segment
        idx_m = pk[2:3, :] + (t_max + n_l)          # offset into Um segment
        vals = pltpu.bitcast(pk[3:4, :], jnp.float32)   # (1, blk) f32 values

        fac = fac_ref[...]                          # (3*rank, n_tot) block-diag
        n_tot = fac.shape[1]

        # Combined one-hot (n_tot, blk): one 1 per segment per column.  The
        # block-diagonal structure of `fac` keeps the segments independent.
        iota = jax.lax.broadcasted_iota(jnp.int32, (n_tot, blk), 0)
        onehot = ((iota == idx_t) | (iota == idx_l) | (iota == idx_m)
                  ).astype(jnp.float32)

        # Single fused gather: (3*rank, n_tot) @ (n_tot, blk) -> (3*rank, blk).
        g = jnp.dot(fac, onehot, preferred_element_type=jnp.float32)

        a = g[0:rank, :] * g[rank:2 * rank, :] * g[2 * rank:3 * rank, :]
        row_sum = jnp.maximum(jnp.sum(a, axis=0, keepdims=True), 1e-10)
        data_term = jnp.sum(vals * jnp.log(row_sum))        # scalar

        out_ref[...] = out_ref[...] + data_term * scale_ref[p]


@jax.jit
def _cntf_forward_impl(subs_list, vals_list, ws_sel, ul, um):
    num_tensors = len(subs_list)
    rank = ul.shape[1]
    nl, nm = ul.shape[0], um.shape[0]
    t_max = max(w.shape[0] for w in ws_sel)
    n_tot = t_max + nl + nm
    nnz_max = max(s.shape[0] for s in subs_list)

    # Lane-dense nnz blocking: big blocks amortize the ~600-cycle per-grid-step
    # overhead; bound blk by the (n_tot, blk) one-hot VMEM footprint (~8 MiB).
    # TODO(synk): for very large Nl/Nm chunk the one-hot contraction (or do the
    # row gathers in the wrapper with jnp.take) instead of shrinking blk.
    onehot_budget = 8 * 1024 * 1024
    blk_from_vmem = (onehot_budget // (4 * n_tot)) // 128 * 128
    blk_cap = min(8192, max(128, blk_from_vmem))
    blk = max(128, min(blk_cap, pl.cdiv(nnz_max, 128) * 128))
    nnz_pad = pl.cdiv(nnz_max, blk) * blk
    n_blocks = nnz_pad // blk

    # --- Pack subs (rows 0-2) + bitcast vals (row 3) into one 8-sublane slab.
    def pack_one(s, v):
        n = s.shape[0]
        rows = jnp.zeros((8, nnz_pad), dtype=jnp.int32)
        rows = rows.at[0:3, :n].set(s.T.astype(jnp.int32))
        v_bits = jax.lax.bitcast_convert_type(
            v.astype(jnp.float32).reshape(-1), jnp.int32)
        rows = rows.at[3, :n].set(v_bits)
        return rows

    packed = jnp.stack([pack_one(s, v)
                        for s, v in zip(subs_list, vals_list)])   # (P, 8, nnz_pad)

    # --- Block-diagonal fused factor matrix per tensor: (3*rank, n_tot).
    def fused_factor(w):
        f = jnp.zeros((3 * rank, n_tot), dtype=jnp.float32)
        f = f.at[0:rank, 0:w.shape[0]].set(w.astype(jnp.float32).T)
        f = f.at[rank:2 * rank, t_max:t_max + nl].set(ul.astype(jnp.float32).T)
        f = f.at[2 * rank:3 * rank, t_max + nl:].set(um.astype(jnp.float32).T)
        return f

    fac = jnp.stack([fused_factor(w) for w in ws_sel])            # (P, 3r, n_tot)

    # --- Hoisted per-tensor scalars (SMEM).
    ul_sum = jnp.sum(ul, axis=0)
    um_sum = jnp.sum(um, axis=0)
    sum_m = jnp.stack([jnp.sum(jnp.sum(w, axis=0) * ul_sum * um_sum)
                       for w in ws_sel]).astype(jnp.float32)       # (P,)
    tps = jnp.asarray([w.shape[0] for w in ws_sel], dtype=jnp.float32)
    scale = (-1.0 / (tps * num_tensors)).astype(jnp.float32)       # (P,)
    bias = (sum_m / (tps * num_tensors)).astype(jnp.float32)       # (P,)
    nblk = jnp.asarray([pl.cdiv(s.shape[0], blk) for s in subs_list],
                       dtype=jnp.int32)                            # (P,)

    # --- VMEM budget (double-buffered inputs + in-kernel intermediates).
    vmem_est = (2 * 8 * blk * 4            # packed slab, double-buffered
                + 2 * 3 * rank * n_tot * 4  # fused factors, double-buffered
                + n_tot * blk * 4           # combined one-hot
                + 3 * rank * blk * 4        # MXU result slab
                + 8 * blk * 4)              # misc temps
    vmem_limit = int(min(64 * 1024 * 1024, max(32 * 1024 * 1024, 2 * vmem_est)))

    kernel = functools.partial(_cntf_fused_kernel,
                               rank=rank, t_max=t_max, n_l=nl)

    partials = pl.pallas_call(
        kernel,
        out_shape=jax.ShapeDtypeStruct((num_tensors, 1, 1), jnp.float32),
        grid=(num_tensors, n_blocks),
        in_specs=[
            pl.BlockSpec(memory_space=pltpu.MemorySpace.SMEM),          # nblk
            pl.BlockSpec(memory_space=pltpu.MemorySpace.SMEM),          # scale
            pl.BlockSpec(memory_space=pltpu.MemorySpace.SMEM),          # bias
            pl.BlockSpec((None, 8, blk), lambda p, k: (p, 0, k)),       # packed
            pl.BlockSpec((None, 3 * rank, n_tot), lambda p, k: (p, 0, 0)),  # fac
        ],
        out_specs=pl.BlockSpec((None, 1, 1), lambda p, k: (p, 0, 0)),
        compiler_params=pltpu.CompilerParams(
            dimension_semantics=("parallel", "arbitrary"),
            vmem_limit_bytes=vmem_limit),
    )(nblk, scale, bias, packed, fac)

    return jnp.sum(partials)


def cntf_forward(Xs, idx, Ws, Ul, Um):
    """forward(Xs, idx) = -sum_i loglikelihood(Xs[i], idx[i]) / len(Xs)."""
    subs_list = tuple(subs for subs, _ in Xs)
    vals_list = tuple(vals for _, vals in Xs)
    ws_sel = tuple(Ws[p] for p in idx)
    return _cntf_forward_impl(subs_list, vals_list, ws_sel, Ul, Um)


# ----------------------------------------------------------------------------
# Pure-JAX reference (mirrors the PyTorch code) for verification
# ----------------------------------------------------------------------------
def _ref_forward(Xs, idx, Ws, Ul, Um):
    def ll(subs, vals, w_p):
        sum_m = jnp.sum(jnp.sum(w_p, axis=0) * jnp.sum(Ul, axis=0) * jnp.sum(Um, axis=0))
        a = w_p[subs[:, 0], :] * Ul[subs[:, 1], :] * Um[subs[:, 2], :]
        val = jnp.sum(vals[:, 0] * jnp.log(jnp.maximum(jnp.sum(a, axis=1), 1e-10)))
        return (val - sum_m) / w_p.shape[0]

    total = jnp.float32(0.0)
    for i, p in enumerate(idx):
        subs, vals = Xs[i]
        total = total + ll(subs, vals, Ws[p])
    return -total / len(Xs)


# ----------------------------------------------------------------------------
# Main: deterministic parameters and synthetic sparse inputs
# ----------------------------------------------------------------------------
if __name__ == "__main__":
    key = jax.random.PRNGKey(0)

    # Small model dimensions (analogous to the nn.Module __init__ args).
    Ts = [8, 12]          # time extents of the two sparse tensors
    Nl = 16               # number of locations
    Nm = 16               # number of modes
    rank = 8
    nnz = 64              # nonzeros per sparse tensor
    idx = [0, 1]          # which W to use for each Xs[i]

    # Parameters: torch.rand -> uniform [0, 1)
    keys = jax.random.split(key, 8)
    Ws = [
        jax.random.uniform(keys[0], (Ts[0], rank), dtype=jnp.float32),
        jax.random.uniform(keys[1], (Ts[1], rank), dtype=jnp.float32),
    ]
    Ul = jax.random.uniform(keys[2], (Nl, rank), dtype=jnp.float32)
    Um = jax.random.uniform(keys[3], (Nm, rank), dtype=jnp.float32)

    # Synthetic sparse tensors (COO): subs (nnz, 3), vals (nnz, 1)
    Xs = []
    for i, p in enumerate(idx):
        k_t, k_l, k_m, k_v = jax.random.split(keys[4 + i], 4)
        subs = jnp.stack(
            [
                jax.random.randint(k_t, (nnz,), 0, Ts[p], dtype=jnp.int32),
                jax.random.randint(k_l, (nnz,), 0, Nl, dtype=jnp.int32),
                jax.random.randint(k_m, (nnz,), 0, Nm, dtype=jnp.int32),
            ],
            axis=1,
        )
        vals = jax.random.uniform(k_v, (nnz, 1), dtype=jnp.float32) * 5.0 + 0.1
        Xs.append((subs, vals))

    out = cntf_forward(Xs, idx, Ws, Ul, Um)
    out = jax.block_until_ready(out)

    ref = _ref_forward(Xs, idx, Ws, Ul, Um)
    assert jnp.allclose(out, ref, rtol=1e-4, atol=1e-4), (out, ref)

    print("KERNEL_OK")
</pallas_src>

<mosaic_0001>
module attributes {stable_mosaic.version = 11 : i64} {
  func.func @_cntf_fused_kernel(%arg0: i32, %arg1: i32, %arg2: memref<2xi32, #tpu.memory_space<smem>>, %arg3: memref<2xf32, #tpu.memory_space<smem>>, %arg4: memref<2xf32, #tpu.memory_space<smem>>, %arg5: memref<1x8x128xi32, #tpu.memory_space<vmem>>, %arg6: memref<1x24x44xf32, #tpu.memory_space<vmem>>, %arg7: memref<1x1x1xf32, #tpu.memory_space<vmem>>) attributes {dimension_semantics = [#tpu.dimension_semantics<parallel>, #tpu.dimension_semantics<arbitrary>], iteration_bounds = array<i64: 2, 1>, scalar_prefetch = 0 : i64, scratch_operands = 0 : i64, tpu.core_type = #tpu.core_type<tc>, window_params = [{transform_indices = @transform_0, window_bounds = array<i64: 2>}, {transform_indices = @transform_1, window_bounds = array<i64: 2>}, {transform_indices = @transform_2, window_bounds = array<i64: 2>}, {transform_indices = @transform_3, window_bounds = array<i64: 1, 8, 128>}, {transform_indices = @transform_4, window_bounds = array<i64: 1, 24, 44>}, {transform_indices = @transform_5, window_bounds = array<i64: 1, 1, 1>}]} {
    %c0_i32 = arith.constant 0 : i32
    %0 = arith.cmpi eq, %arg1, %c0_i32 : i32
    %1 = arith.extui %0 : i1 to i32
    %c0_i32_0 = arith.constant 0 : i32
    %2 = arith.cmpi ne, %1, %c0_i32_0 : i32
    scf.if %2 {
      %8 = arith.index_cast %arg0 : i32 to index
      %9 = memref.load %arg4[%8] : memref<2xf32, #tpu.memory_space<smem>>
      %10 = vector.broadcast %9 : f32 to vector<1x1xf32>
      %c0 = arith.constant 0 : index
      %c0_2 = arith.constant 0 : index
      %c0_3 = arith.constant 0 : index
      %11 = vector.load %arg7[%c0, %c0_2, %c0_3] : memref<1x1x1xf32, #tpu.memory_space<vmem>>, vector<1x1x1xf32>
      %12 = vector.shape_cast %11 : vector<1x1x1xf32> to vector<1x1xf32>
      %13 = vector.shape_cast %10 : vector<1x1xf32> to vector<1x1x1xf32>
      tpu.vector_store %arg7[%c0, %c0_2, %c0_3], %13 {strides = array<i32>} : memref<1x1x1xf32, #tpu.memory_space<vmem>>, vector<1x1x1xf32>,
    } else {
    }
    %3 = arith.index_cast %arg0 : i32 to index
    %4 = memref.load %arg2[%3] : memref<2xi32, #tpu.memory_space<smem>>
    %5 = arith.cmpi slt, %arg1, %4 : i32
    %6 = arith.extui %5 : i1 to i32
    %c0_i32_1 = arith.constant 0 : i32
    %7 = arith.cmpi ne, %6, %c0_i32_1 : i32
    scf.if %7 {
      %c0 = arith.constant 0 : index
      %c0_2 = arith.constant 0 : index
      %c0_3 = arith.constant 0 : index
      %8 = vector.load %arg5[%c0, %c0_2, %c0_3] : memref<1x8x128xi32, #tpu.memory_space<vmem>>, vector<1x8x128xi32>
      %9 = vector.shape_cast %8 : vector<1x8x128xi32> to vector<8x128xi32>
      %10 = vector.extract_strided_slice %9 {offsets = [0, 0], sizes = [1, 128], strides = [1, 1]} : vector<8x128xi32> to vector<1x128xi32>
      %11 = vector.extract_strided_slice %9 {offsets = [1, 0], sizes = [1, 128], strides = [1, 1]} : vector<8x128xi32> to vector<1x128xi32>
      %c12_i32 = arith.constant 12 : i32
      %12 = vector.broadcast %c12_i32 : i32 to vector<1x128xi32>
      %13 = arith.addi %11, %12 : vector<1x128xi32>
      %14 = vector.extract_strided_slice %9 {offsets = [2, 0], sizes = [1, 128], strides = [1, 1]} : vector<8x128xi32> to vector<1x128xi32>
      %c28_i32 = arith.constant 28 : i32
      %15 = vector.broadcast %c28_i32 : i32 to vector<1x128xi32>
      %16 = arith.addi %14, %15 : vector<1x128xi32>
      %17 = vector.extract_strided_slice %9 {offsets = [3, 0], sizes = [1, 128], strides = [1, 1]} : vector<8x128xi32> to vector<1x128xi32>
      %18 = tpu.bitcast %17 : vector<1x128xi32> -> vector<1x128xf32>
      %c0_4 = arith.constant 0 : index
      %c0_5 = arith.constant 0 : index
      %c0_6 = arith.constant 0 : index
      %19 = vector.load %arg6[%c0_4, %c0_5, %c0_6] : memref<1x24x44xf32, #tpu.memory_space<vmem>>, vector<1x24x44xf32>
      %20 = vector.shape_cast %19 : vector<1x24x44xf32> to vector<24x44xf32>
      %21 = tpu.iota {dimensions = array<i32: 0>} : vector<44x128xi32>
      %22 = vector.broadcast %10 : vector<1x128xi32> to vector<44x128xi32>
      %23 = arith.cmpi eq, %21, %22 : vector<44x128xi32>
      %24 = vector.broadcast %13 : vector<1x128xi32> to vector<44x128xi32>
      %25 = arith.cmpi eq, %21, %24 : vector<44x128xi32>
      %26 = arith.ori %23, %25 : vector<44x128xi1>
      %27 = vector.broadcast %16 : vector<1x128xi32> to vector<44x128xi32>
      %28 = arith.cmpi eq, %21, %27 : vector<44x128xi32>
      %29 = arith.ori %26, %28 : vector<44x128xi1>
      %30 = arith.extui %29 : vector<44x128xi1> to vector<44x128xi32>
      %31 = arith.sitofp %30 : vector<44x128xi32> to vector<44x128xf32>
      %cst = arith.constant dense<0.000000e+00> : vector<24x128xf32>
      %32 = tpu.matmul %20, %31, %cst {dimension_numbers = #tpu.dot_dimension_numbers<[1], [0], [0], [1], [0, 0, 1, 1], [], []>} : vector<24x44xf32>, vector<44x128xf32>, vector<24x128xf32> -> vector<24x128xf32>
      %33 = vector.extract_strided_slice %32 {offsets = [0, 0], sizes = [8, 128], strides = [1, 1]} : vector<24x128xf32> to vector<8x128xf32>
      %34 = vector.extract_strided_slice %32 {offsets = [8, 0], sizes = [8, 128], strides = [1, 1]} : vector<24x128xf32> to vector<8x128xf32>
      %35 = arith.mulf %33, %34 : vector<8x128xf32>
      %36 = vector.extract_strided_slice %32 {offsets = [16, 0], sizes = [8, 128], strides = [1, 1]} : vector<24x128xf32> to vector<8x128xf32>
      %37 = arith.mulf %35, %36 : vector<8x128xf32>
      %cst_7 = arith.constant dense<0.000000e+00> : vector<128xf32>
      %38 = vector.multi_reduction <add>, %37, %cst_7 [0] : vector<8x128xf32> to vector<128xf32>
      %39 = vector.shape_cast %38 : vector<128xf32> to vector<1x128xf32>
      %cst_8 = arith.constant 1.000000e-10 : f32
      %40 = vector.broadcast %cst_8 : f32 to vector<1x128xf32>
      %41 = arith.maximumf %39, %40 : vector<1x128xf32>
      %42 = math.log %41 : vector<1x128xf32>
      %43 = arith.mulf %18, %42 : vector<1x128xf32>
      %44 = vector.shape_cast %43 : vector<1x128xf32> to vector<1x1x128xf32>
      %cst_9 = arith.constant dense<0.000000e+00> : vector<1xf32>
      %45 = vector.multi_reduction <add>, %44, %cst_9 [1, 2] : vector<1x1x128xf32> to vector<1xf32>
      %46 = vector.shape_cast %45 : vector<1xf32> to vector<1x1x1xf32>
      %47 = vector.extract %46[0, 0, 0] : f32 from vector<1x1x1xf32>
      %c0_10 = arith.constant 0 : index
      %c0_11 = arith.constant 0 : index
      %c0_12 = arith.constant 0 : index
      %48 = vector.load %arg7[%c0_10, %c0_11, %c0_12] : memref<1x1x1xf32, #tpu.memory_space<vmem>>, vector<1x1x1xf32>
      %49 = vector.shape_cast %48 : vector<1x1x1xf32> to vector<1x1xf32>
      %50 = arith.index_cast %arg0 : i32 to index
      %51 = memref.load %arg3[%50] : memref<2xf32, #tpu.memory_space<smem>>
      %52 = arith.mulf %47, %51 : f32
      %53 = vector.broadcast %52 : f32 to vector<1x1xf32>
      %54 = arith.addf %49, %53 : vector<1x1xf32>
      %c0_13 = arith.constant 0 : index
      %c0_14 = arith.constant 0 : index
      %c0_15 = arith.constant 0 : index
      %55 = vector.load %arg7[%c0_13, %c0_14, %c0_15] : memref<1x1x1xf32, #tpu.memory_space<vmem>>, vector<1x1x1xf32>
      %56 = vector.shape_cast %55 : vector<1x1x1xf32> to vector<1x1xf32>
      %57 = vector.shape_cast %54 : vector<1x1xf32> to vector<1x1x1xf32>
      tpu.vector_store %arg7[%c0_13, %c0_14, %c0_15], %57 {strides = array<i32>} : memref<1x1x1xf32, #tpu.memory_space<vmem>>, vector<1x1x1xf32>,
    } else {
    }
    return
  }
  func.func @transform_0(%arg0: i32, %arg1: i32) -> i32 {
    %c0_i32 = arith.constant 0 : i32
    %c0_i32_0 = arith.constant 0 : i32
    return %c0_i32 : i32
  }
  func.func @transform_1(%arg0: i32, %arg1: i32) -> i32 {
    %c0_i32 = arith.constant 0 : i32
    %c0_i32_0 = arith.constant 0 : i32
    return %c0_i32 : i32
  }
  func.func @transform_2(%arg0: i32, %arg1: i32) -> i32 {
    %c0_i32 = arith.constant 0 : i32
    %c0_i32_0 = arith.constant 0 : i32
    return %c0_i32 : i32
  }
  func.func @transform_3(%arg0: i32, %arg1: i32) -> (i32, i32, i32) {
    %c0_i32 = arith.constant 0 : i32
    %c0_i32_0 = arith.constant 0 : i32
    return %arg0, %c0_i32, %arg1 : i32, i32, i32
  }
  func.func @transform_4(%arg0: i32, %arg1: i32) -> (i32, i32, i32) {
    %c0_i32 = arith.constant 0 : i32
    %c0_i32_0 = arith.constant 0 : i32
    %c0_i32_1 = arith.constant 0 : i32
    return %arg0, %c0_i32, %c0_i32_0 : i32, i32, i32
  }
  func.func @transform_5(%arg0: i32, %arg1: i32) -> (i32, i32, i32) {
    %c0_i32 = arith.constant 0 : i32
    %c0_i32_0 = arith.constant 0 : i32
    %c0_i32_1 = arith.constant 0 : i32
    return %arg0, %c0_i32, %c0_i32_0 : i32, i32, i32
  }
}

</mosaic_0001>

<llo_original>
// kernel: _cntf_forward_impl.1
$region0: #{_cntf_forward_impl.1}
  #allocation0 [shape = 'u32[]', space=smem, size = 0x4, offset = 0x4, fixed_abs, tag = 'smem constant byte address 0x4 - core index']
  #allocation1 [shape = 'u32[144,128]{1,0:T(1,128)}', space=vmem, size = 0x12000, scoped, tag = 'internal scratch']
  %s0 = inlined_call_operand.vmem [shape: s32[2], index: 0, kind: input, shape index: {}]
  %s1 = inlined_call_operand.vmem [shape: f32[2], index: 1, kind: input, shape index: {}]
  %s2 = inlined_call_operand.vmem [shape: f32[2], index: 2, kind: input, shape index: {}]
  %s3 = inlined_call_operand.vmem [shape: s32[2,8,128], index: 3, kind: input, shape index: {}]
  %s4 = inlined_call_operand.vmem [shape: f32[2,24,44], index: 4, kind: input, shape index: {}]
  %s5 = inlined_call_operand.vmem [shape: f32[2,1,1], index: 5, kind: output, shape index: {}]
  %s6 = sld [smem:[#allocation0]]
  $region73: #{_cntf_forward_impl.1} parent=0
    _
  %s8 = ssub.s32 1, %s6
  %s9 = scalar_select 0, %s8, %s6
  $region1: #{_cntf_forward_impl.1} parent=0
    #allocation2 [shape = 'u8[512]{0}', space=smem, size = 0x200, scoped, tag = 'input window, operand 0, single buffered']
    #allocation3 [shape = 's32[2]{0}', space=sflag, size = 0x8, scoped, tag = 'scoped memory for _cntf_forward_impl.1']
    #allocation4 [shape = 'u8[512]{0}', space=smem, size = 0x200, scoped, tag = 'input window, operand 1, single buffered']
    #allocation5 [shape = 's32[1]{0}', space=sflag, size = 0x4, scoped, tag = 'scoped memory for _cntf_forward_impl.1']
    #allocation6 [shape = 'u8[512]{0}', space=smem, size = 0x200, scoped, tag = 'input window, operand 2, single buffered']
    %10 = vsyncpa [#allocation3], 0
    %11 = vsyncpa [#allocation5], 0
    loop: start=0, step=1, limit=4
    $region2: #{_cntf_forward_impl.1} parent=1 // loop_pre_header
      _
    $region3: #{_cntf_forward_impl.1} parent=1 // loop_header
      %s13 = sphi 0, %s17
      %p14 = scmp.ge.s32.totalorder %s13, 4
      %s20 = sphi 0, %s32
      %s21 = sphi 0, %s28
      %s22 = sphi 0, %s20
      %s23 = sphi 0, %s21
      %s24 = sphi 0, %s22
      %s25 = sphi 0, %s23
      %s33 = sphi 0, %s33
      %s35 = sphi 0, %s33
      %s36 = sphi 0, %s35
      %s50 = sphi 0, %s36
      %s54 = sphi 0, %s54
      %s56 = sphi 0, %s54
      %s57 = sphi 0, %s56
      %s71 = sphi 0, %s57
      %s75 = sphi 0, %s75
      %s77 = sphi 0, %s75
      %s78 = sphi 0, %s77
      %s92 = sphi 0, %s78
      %s100 = sphi 0, %s102
      %s103 = sphi 0, %s100
      %s104 = sphi 0, %s103
      %s120 = sphi 0, %s104
      %s126 = sphi 0, %s128
      %s129 = sphi 0, %s126
      %s130 = sphi 0, %s129
      %s146 = sphi 0, %s130
      %s152 = sphi 0, %s154
      %s155 = sphi 0, %s152
      %s156 = sphi 0, %s155
      %s172 = sphi 0, %s156
    $region4: #{_cntf_forward_impl.1} parent=1 // loop_header_branch
      %16 = sbr.rel (%p14) target = $region8
    $region5: #{_cntf_forward_impl.1} parent=1 // loop_body
      %s18 = ssub.s32 %s13, 1
      %s19 = ssub.s32 %s13, 2
      %s26 = sadd.s32 1, %s21
      %p27 = scmp.ge.s32.totalorder %s26, 1
      %s28 = scalar_select %p27, 0, %s26
      %s29 = sadd.s32 1, %s20
      %s30 = scalar_select %p27, %s29, %s20
      %p31 = scmp.ge.s32.totalorder %s30, 2
      %s32 = scalar_select %p31, 0, %s30
      %s34 = sadd.s32 %s33, 1
      %p37 = scmp.eq.s32.totalorder %s13, 1
      %p38 = scmp.ne.s32.totalorder %s33, %s35
      %p39 = scmp.eq.s32.totalorder %s13, 0
      %p40 = por %p38, %p39
      %p41 = scmp.ne.s32.totalorder %s33, %s35
      %p42 = scmp.eq.s32.totalorder %s18, 1
      %p43 = por %p41, %p42
      %p44 = scmp.ne.s32.totalorder %s35, %s36
      %p45 = scmp.eq.s32.totalorder %s18, 0
      %p46 = por %p44, %p45
      %p47 = scmp.ne.s32.totalorder %s35, %s36
      %p48 = scmp.eq.s32.totalorder %s19, 1
      %p49 = por %p47, %p48
      %p51 = scmp.ne.s32.totalorder %s36, %s50
      %p52 = scmp.eq.s32.totalorder %s19, 0
      %p53 = por %p51, %p52
      %s55 = sadd.s32 %s54, 1
      %p58 = scmp.eq.s32.totalorder %s13, 1
      %p59 = scmp.ne.s32.totalorder %s54, %s56
      %p60 = scmp.eq.s32.totalorder %s13, 0
      %p61 = por %p59, %p60
      %p62 = scmp.ne.s32.totalorder %s54, %s56
      %p63 = scmp.eq.s32.totalorder %s18, 1
      %p64 = por %p62, %p63
      %p65 = scmp.ne.s32.totalorder %s56, %s57
      %p66 = scmp.eq.s32.totalorder %s18, 0
      %p67 = por %p65, %p66
      %p68 = scmp.ne.s32.totalorder %s56, %s57
      %p69 = scmp.eq.s32.totalorder %s19, 1
      %p70 = por %p68, %p69
      %p72 = scmp.ne.s32.totalorder %s57, %s71
      %p73 = scmp.eq.s32.totalorder %s19, 0
      %p74 = por %p72, %p73
      %s76 = sadd.s32 %s75, 1
      %p79 = scmp.eq.s32.totalorder %s13, 1
      %p80 = scmp.ne.s32.totalorder %s75, %s77
      %p81 = scmp.eq.s32.totalorder %s13, 0
      %p82 = por %p80, %p81
      %p83 = scmp.ne.s32.totalorder %s75, %s77
      %p84 = scmp.eq.s32.totalorder %s18, 1
      %p85 = por %p83, %p84
      %p86 = scmp.ne.s32.totalorder %s77, %s78
      %p87 = scmp.eq.s32.totalorder %s18, 0
      %p88 = por %p86, %p87
      %p89 = scmp.ne.s32.totalorder %s77, %s78
      %p90 = scmp.eq.s32.totalorder %s19, 1
      %p91 = por %p89, %p90
      %p93 = scmp.ne.s32.totalorder %s78, %s92
      %p94 = scmp.eq.s32.totalorder %s19, 0
      %p95 = por %p93, %p94
      %s96 = ssub.s32 %s20, %s32
      %s97 = ssub.s32 %s21, %s28
      %s98 = sor.u32 %s96, %s97
      %p99 = scmp.eq.s32.totalorder %s98, 0
      %s101 = sadd.s32 %s100, 1
      %s102 = scalar_select %p99, %s100, %s101
      %p105 = pneg %p99
      %p106 = scmp.eq.s32.totalorder %s13, 1
      %p107 = por %p105, %p106
      %p108 = scmp.ne.s32.totalorder %s100, %s103
      %p109 = scmp.eq.s32.totalorder %s13, 0
      %p110 = por %p108, %p109
      %p111 = scmp.ne.s32.totalorder %s100, %s103
      %p112 = scmp.eq.s32.totalorder %s18, 1
      %p113 = por %p111, %p112
      %p114 = scmp.ne.s32.totalorder %s103, %s104
      %p115 = scmp.eq.s32.totalorder %s18, 0
      %p116 = por %p114, %p115
      %p117 = scmp.ne.s32.totalorder %s103, %s104
      %p118 = scmp.eq.s32.totalorder %s19, 1
      %p119 = por %p117, %p118
      %p121 = scmp.ne.s32.totalorder %s104, %s120
      %p122 = scmp.eq.s32.totalorder %s19, 0
      %p123 = por %p121, %p122
      %s124 = ssub.s32 %s20, %s32
      %p125 = scmp.eq.s32.totalorder %s124, 0
      %s127 = sadd.s32 %s126, 1
      %s128 = scalar_select %p125, %s126, %s127
      %p131 = pneg %p125
      %p132 = scmp.eq.s32.totalorder %s13, 1
      %p133 = por %p131, %p132
      %p134 = scmp.ne.s32.totalorder %s126, %s129
      %p135 = scmp.eq.s32.totalorder %s13, 0
      %p136 = por %p134, %p135
      %p137 = scmp.ne.s32.totalorder %s126, %s129
      %p138 = scmp.eq.s32.totalorder %s18, 1
      %p139 = por %p137, %p138
      %p140 = scmp.ne.s32.totalorder %s129, %s130
      %p141 = scmp.eq.s32.totalorder %s18, 0
      %p142 = por %p140, %p141
      %p143 = scmp.ne.s32.totalorder %s129, %s130
      %p144 = scmp.eq.s32.totalorder %s19, 1
      %p145 = por %p143, %p144
      %p147 = scmp.ne.s32.totalorder %s130, %s146
      %p148 = scmp.eq.s32.totalorder %s19, 0
      %p149 = por %p147, %p148
      %s150 = ssub.s32 %s20, %s32
      %p151 = scmp.eq.s32.totalorder %s150, 0
      %s153 = sadd.s32 %s152, 1
      %s154 = scalar_select %p151, %s152, %s153
      %p157 = pneg %p151
      %p158 = scmp.eq.s32.totalorder %s13, 1
      %p159 = por %p157, %p158
      %p160 = scmp.ne.s32.totalorder %s152, %s155
      %p161 = scmp.eq.s32.totalorder %s13, 0
      %p162 = por %p160, %p161
      %p163 = scmp.ne.s32.totalorder %s152, %s155
      %p164 = scmp.eq.s32.totalorder %s18, 1
      %p165 = por %p163, %p164
      %p166 = scmp.ne.s32.totalorder %s155, %s156
      %p167 = scmp.eq.s32.totalorder %s18, 0
      %p168 = por %p166, %p167
      %p169 = scmp.ne.s32.totalorder %s155, %s156
      %p170 = scmp.eq.s32.totalorder %s19, 1
      %p171 = por %p169, %p170
      %p173 = scmp.ne.s32.totalorder %s156, %s172
      %p174 = scmp.eq.s32.totalorder %s19, 0
      %p175 = por %p173, %p174
      %p176 = scmp.le.s32.totalorder 1, %s13
      %p177 = scmp.lt.s32.totalorder %s13, 3
      %p178 = pnand %p176, %p177
      %p179 = pneg %p178
      // Predicated region
      $region9: #{_cntf_forward_impl.1} parent=5 // pred_check
        _
      $region10: #{_cntf_forward_impl.1} parent=5 // pred_check_branch
        %181 = sbr.rel (%p178) target = $region12
      $region11: #{_cntf_forward_impl.1} parent=5 // pred_region
        %s182 = ssub.s32 %s13, 1
        // Predicated region
        $region13: #{_cntf_forward_impl.1} parent=11 // pred_check
          %p183 = pneg %p46
        $region14: #{_cntf_forward_impl.1} parent=11 // pred_check_branch
          %185 = sbr.rel (%p183) target = $region16
        $region15: #{_cntf_forward_impl.1} parent=11 // pred_region
          %s187 = ssub.s32 16, 16
          %188 = vsyncadd [#allocation3], %s187
          %s190 = sshll.u32 %s0, 4
          %s191 = int_to_ptr.vmem [resolvable:$true] %s190
          %193 = dma.vmem_to_smem %s191, 16, [#allocation2], [#allocation3]
        $region16: #{_cntf_forward_impl.1} parent=11 // pred_fallthru
          _
        // Predicated region
        $region17: #{_cntf_forward_impl.1} parent=11 // pred_check
          %p194 = pneg %p67
        $region18: #{_cntf_forward_impl.1} parent=11 // pred_check_branch
          %196 = sbr.rel (%p194) target = $region20
        $region19: #{_cntf_forward_impl.1} parent=11 // pred_region
          %s198 = ssub.s32 16, 16
          %199 = vsyncadd [#allocation5], %s198
          %s201 = sshll.u32 %s1, 4
          %s202 = int_to_ptr.vmem [resolvable:$true] %s201
          %204 = dma.vmem_to_smem %s202, 16, [#allocation4], [#allocation5]
        $region20: #{_cntf_forward_impl.1} parent=11 // pred_fallthru
          _
        // Predicated region
        $region21: #{_cntf_forward_impl.1} parent=11 // pred_check
          %p205 = pneg %p88
        $region22: #{_cntf_forward_impl.1} parent=11 // pred_check_branch
          %207 = sbr.rel (%p205) target = $region24
        $region23: #{_cntf_forward_impl.1} parent=11 // pred_region
          %s209 = ssub.s32 16, 16
          %210 = vsyncadd [#allocation5], %s209
          %s212 = sshll.u32 %s2, 4
          %s213 = int_to_ptr.vmem [resolvable:$true] %s212
          %215 = dma.vmem_to_smem %s213, 16, [#allocation6], [#allocation5]
        $region24: #{_cntf_forward_impl.1} parent=11 // pred_fallthru
          _
      $region12: #{_cntf_forward_impl.1} parent=5 // pred_fallthru
        _
      %p216 = scmp.lt.s32.totalorder %s13, 2
      // Predicated region
      $region25: #{_cntf_forward_impl.1} parent=5 // pred_check
        %p217 = pneg %p216
      $region26: #{_cntf_forward_impl.1} parent=5 // pred_check_branch
        %219 = sbr.rel (%p217) target = $region28
      $region27: #{_cntf_forward_impl.1} parent=5 // pred_region
        // Predicated region
        $region29: #{_cntf_forward_impl.1} parent=27 // pred_check
          %p220 = pneg %p110
        $region30: #{_cntf_forward_impl.1} parent=27 // pred_check_branch
          %222 = sbr.rel (%p220) target = $region32
        $region31: #{_cntf_forward_impl.1} parent=27 // pred_region
          %p223 = scmp.lt.s32.totalorder %s20, 1
          %s224 = scalar_select %p223, %s20, 1
          %p225 = scmp.lt.s32.totalorder %s21, 0
          %s226 = scalar_select %p225, %s21, 0
          %s227 = sadd.s32 %s226, %s224
          %s228 = smul.addr %s227, 8
          %s229 = scalar_lea.vmem %s3, %s228
        $region32: #{_cntf_forward_impl.1} parent=27 // pred_fallthru
          _
        // Predicated region
        $region33: #{_cntf_forward_impl.1} parent=27 // pred_check
          %p230 = pneg %p136
        $region34: #{_cntf_forward_impl.1} parent=27 // pred_check_branch
          %232 = sbr.rel (%p230) target = $region36
        $region35: #{_cntf_forward_impl.1} parent=27 // pred_region
          %p233 = scmp.lt.s32.totalorder %s20, 1
          %s234 = scalar_select %p233, %s20, 1
          %s235 = smul.addr %s234, 3
          %s236 = smul.addr %s235, 8
          %s237 = scalar_lea.vmem %s4, %s236
        $region36: #{_cntf_forward_impl.1} parent=27 // pred_fallthru
          _
      $region28: #{_cntf_forward_impl.1} parent=5 // pred_fallthru
        _
      %p238 = scmp.le.s32.totalorder 1, %s13
      %p239 = scmp.lt.s32.totalorder %s13, 3
      %p240 = pnand %p238, %p239
      %p241 = pneg %p240
      // Predicated region
      $region37: #{_cntf_forward_impl.1} parent=5 // pred_check
        _
      $region38: #{_cntf_forward_impl.1} parent=5 // pred_check_branch
        %243 = sbr.rel (%p240) target = $region40
      $region39: #{_cntf_forward_impl.1} parent=5 // pred_region
        %s244 = ssub.s32 %s13, 1
        // Predicated region
        $region41: #{_cntf_forward_impl.1} parent=39 // pred_check
          %p245 = pneg %p46
        $region42: #{_cntf_forward_impl.1} parent=39 // pred_check_branch
          %247 = sbr.rel (%p245) target = $region44
        $region43: #{_cntf_forward_impl.1} parent=39 // pred_region
          %248 = dma.done [#allocation3], 16
        $region44: #{_cntf_forward_impl.1} parent=39 // pred_fallthru
          _
        // Predicated region
        $region45: #{_cntf_forward_impl.1} parent=39 // pred_check
          %p249 = pneg %p67
        $region46: #{_cntf_forward_impl.1} parent=39 // pred_check_branch
          %251 = sbr.rel (%p249) target = $region48
        $region47: #{_cntf_forward_impl.1} parent=39 // pred_region
          %252 = dma.done [#allocation5], 16
        $region48: #{_cntf_forward_impl.1} parent=39 // pred_fallthru
          _
        // Predicated region
        $region49: #{_cntf_forward_impl.1} parent=39 // pred_check
          %p253 = pneg %p88
        $region50: #{_cntf_forward_impl.1} parent=39 // pred_check_branch
          %255 = sbr.rel (%p253) target = $region52
        $region51: #{_cntf_forward_impl.1} parent=39 // pred_region
          %256 = dma.done [#allocation5], 16
        $region52: #{_cntf_forward_impl.1} parent=39 // pred_fallthru
          _
        %257 = sfence
        %p258 = pneg %p46
        %p259 = pneg %p43
        %p260 = pneg %p67
        %p261 = pneg %p64
        %p262 = pneg %p88
        %p263 = pneg %p85
        %p264 = scmp.lt.s32.totalorder %s22, 1
        %s265 = scalar_select %p264, %s22, 1
        %p266 = scmp.lt.s32.totalorder %s23, 0
        %s267 = scalar_select %p266, %s23, 0
        %s268 = sadd.s32 %s267, %s265
        %s269 = smul.addr %s268, 8
        %s270 = scalar_lea.vmem %s3, %s269
        %p271 = pneg %p116
        %p272 = pneg %p113
        %p273 = scmp.lt.s32.totalorder %s22, 1
        %s274 = scalar_select %p273, %s22, 1
        %s275 = smul.addr %s274, 3
        %s276 = smul.addr %s275, 8
        %s277 = scalar_lea.vmem %s4, %s276
        %p278 = pneg %p142
        %p279 = pneg %p139
        %p280 = pneg %p168
        %p281 = pneg %p165
        %p282 = scmp.lt.s32.totalorder %s22, 1
        %s283 = scalar_select %p282, %s22, 1
        %s284 = scalar_lea.vmem %s5, %s283
        %p285 = scmp.lt.s32.totalorder %s22, 1
        %s286 = scalar_select %p285, %s22, 1
        %p287 = scmp.lt.s32.totalorder %s23, 0
        %s288 = scalar_select %p287, %s23, 0
        %s289 = sadd.s32 %s288, %s286
        %s290 = smul.addr %s289, 8
        %s291 = scalar_lea.vmem %s3, %s290
        %p292 = scmp.lt.s32.totalorder %s22, 1
        %s293 = scalar_select %p292, %s22, 1
        %s294 = smul.addr %s293, 3
        %s295 = smul.addr %s294, 8
        %s296 = scalar_lea.vmem %s4, %s295
        %p297 = scmp.lt.s32.totalorder %s22, 1
        %s298 = scalar_select %p297, %s22, 1
        %s299 = scalar_lea.vmem %s5, %s298
        %p300 = scmp.eq.s32.totalorder %s23, 0
        // Predicated region
        $region53: #{_cntf_forward_impl.1} parent=39 // pred_check
          %p301 = pneg %p300
        $region54: #{_cntf_forward_impl.1} parent=39 // pred_check_branch
          %303 = sbr.rel (%p301) target = $region56
        $region55: #{_cntf_forward_impl.1} parent=39 // pred_region
          %s304 = sld [smem:[#allocation6 + %s22]]
          %v305 = vstv %s304
          %vm306 = vcmask 0
          %307 = vst.msk [vmem:[%s299] sm:$0x1] %vm306, %v305
        $region56: #{_cntf_forward_impl.1} parent=39 // pred_fallthru
          _
        %s308 = sld [smem:[#allocation2 + %s22]]
        %p309 = scmp.lt.s32.totalorder %s23, %s308
        // Predicated region
        $region57: #{_cntf_forward_impl.1} parent=39 // pred_check
          %p310 = pneg %p309
        $region58: #{_cntf_forward_impl.1} parent=39 // pred_check_branch
          %312 = sbr.rel (%p310) target = $region60
        $region59: #{_cntf_forward_impl.1} parent=39 // pred_region
          %v313 = vld [vmem:[%s291] sm:$0xff]
          %v314 = vadd.s32 %v313, 12
          %v315 = vadd.s32 %v313, 28
          %v317 = vld [vmem:[%s296] sm:$0xff]
          %v318 = vld [vmem:[%s296 + $0x8] sm:$0xff]
          %v319 = vld [vmem:[%s296 + $0x10] sm:$0xff]
          %v320 = vlaneseq
          %v321 = vshrl.u32 %v320, 7
          %v322 = vadd.s32 %v321, 8
          %v323 = vadd.s32 %v321, 16
          %v324 = vadd.s32 %v321, 24
          %v325 = vadd.s32 %v321, 32
          %v326 = vadd.s32 %v321, 40
          %v327 = vlaneseq
          %v328 = vshrl.u32 %v327, 7
          %v329 = vsub.s32 0, %v328
          %v330 = vrot.slane %v313, %v329
          %vm331 = vcmp.eq.s32.totalorder %v321, %v330
          %vm332 = vcmp.eq.s32.totalorder %v322, %v330
          %vm333 = vcmp.eq.s32.totalorder %v323, %v330
          %vm334 = vcmp.eq.s32.totalorder %v324, %v330
          %vm335 = vcmp.eq.s32.totalorder %v325, %v330
          %vm336 = vcmp.eq.s32.totalorder %v326, %v330
          %v337 = vlaneseq
          %v338 = vshrl.u32 %v337, 7
          %v339 = vsub.s32 1, %v338
          %v340 = vrot.slane %v314, %v339
          %vm341 = vcmp.eq.s32.totalorder %v321, %v340
          %vm342 = vcmp.eq.s32.totalorder %v322, %v340
          %vm343 = vcmp.eq.s32.totalorder %v323, %v340
          %vm344 = vcmp.eq.s32.totalorder %v324, %v340
          %vm345 = vcmp.eq.s32.totalorder %v325, %v340
          %vm346 = vcmp.eq.s32.totalorder %v326, %v340
          %vm347 = vmor %vm331, %vm341
          %vm348 = vmor %vm332, %vm342
          %vm349 = vmor %vm333, %vm343
          %vm350 = vmor %vm334, %vm344
          %vm351 = vmor %vm335, %vm345
          %vm352 = vmor %vm336, %vm346
          %v353 = vlaneseq
          %v354 = vshrl.u32 %v353, 7
          %v355 = vsub.s32 2, %v354
          %v356 = vrot.slane %v315, %v355
          %vm357 = vcmp.eq.s32.totalorder %v321, %v356
          %vm358 = vcmp.eq.s32.totalorder %v322, %v356
          %vm359 = vcmp.eq.s32.totalorder %v323, %v356
          %vm360 = vcmp.eq.s32.totalorder %v324, %v356
          %vm361 = vcmp.eq.s32.totalorder %v325, %v356
          %vm362 = vcmp.eq.s32.totalorder %v326, %v356
          %vm363 = vmor %vm347, %vm357
          %vm364 = vmor %vm348, %vm358
          %vm365 = vmor %vm349, %vm359
          %vm366 = vmor %vm350, %vm360
          %vm367 = vmor %vm351, %vm361
          %vm368 = vmor %vm352, %vm362
          %v369 = vsel %vm363, 1, 0
          %v370 = vsel %vm364, 1, 0
          %v371 = vsel %vm365, 1, 0
          %v372 = vsel %vm366, 1, 0
          %v373 = vsel %vm367, 1, 0
          %v374 = vsel %vm368, 1, 0
          %v375 = vcvt.s32.f32 %v369
          %v376 = vcvt.s32.f32 %v370
          %v377 = vcvt.s32.f32 %v371
          %v378 = vcvt.s32.f32 %v372
          %v379 = vcvt.s32.f32 %v373
          %v380 = vcvt.s32.f32 %v374
          %vm381 = vcmask 359424
          %v383 = vsel %vm381, %v317, 0
          %v386 = vsel %vm381, %v318, 0
          %v389 = vsel %vm381, %v319, 0
          %vm391 = vcmask 1043456
          %v393 = vsel %vm391, %v380, 0
          %395 = vmatprep.subr.mxu0 0.0
          %396 = vmatpush1.msra.mxu0 0.0
          %397 = vmatprep.subr.mxu0 0.0
          %398 = vmatpush1.msra.mxu0 0.0
          %399 = vmatprep.subr.mxu0 0.0
          %400 = vmatpush1.msra.mxu0 0.0
          %401 = vmatprep.subr.mxu0 0.0
          %402 = vmatpush1.msra.mxu0 0.0
          %403 = vmatprep.subr.mxu0 0.0
          %404 = vmatpush1.msra.mxu0 0.0
          %405 = vmatprep.subr.mxu0 0.0
          %406 = vmatpush1.msra.mxu0 0.0
          %407 = vmatprep.subr.mxu0 0.0
          %408 = vmatpush1.msra.mxu0 0.0
          %409 = vmatprep.subr.mxu0 0.0
          %410 = vmatpush1.msra.mxu0 0.0
          %411 = vmatprep.subr.mxu0 0.0
          %412 = vmatpush1.msra.mxu0 0.0
          %413 = vmatprep.subr.mxu0 0.0
          %414 = vmatpush1.msra.mxu0 0.0
          %415 = vmatprep.subr.mxu0 0.0
          %416 = vmatpush1.msra.mxu0 %v393
          %417 = vmatprep.subr.mxu0 0.0
          %418 = vmatpush1.msra.mxu0 %v379
          %419 = vmatprep.subr.mxu0 0.0
          %420 = vmatpush1.msra.mxu0 %v378
          %421 = vmatprep.subr.mxu0 0.0
          %422 = vmatpush1.msra.mxu0 %v377
          %423 = vmatprep.subr.mxu0 0.0
          %424 = vmatpush1.msra.mxu0 %v376
          %425 = vmatprep.subr.mxu0 0.0
          %426 = vmatpush1.msra.mxu0 %v375
          %427 = vmatprep.subr.mxu0 0.0
          %428 = vmatpush2.msra.mxu0 0.0
          %429 = vmatprep.subr.mxu0 0.0
          %430 = vmatpush2.msra.mxu0 0.0
          %431 = vmatprep.subr.mxu0 0.0
          %432 = vmatpush2.msra.mxu0 0.0
          %433 = vmatprep.subr.mxu0 0.0
          %434 = vmatpush2.msra.mxu0 0.0
          %435 = vmatprep.subr.mxu0 0.0
          %436 = vmatpush2.msra.mxu0 0.0
          %437 = vmatprep.subr.mxu0 0.0
          %438 = vmatpush2.msra.mxu0 0.0
          %439 = vmatprep.subr.mxu0 0.0
          %440 = vmatpush2.msra.mxu0 0.0
          %441 = vmatprep.subr.mxu0 0.0
          %442 = vmatpush2.msra.mxu0 0.0
          %443 = vmatprep.subr.mxu0 0.0
          %444 = vmatpush2.msra.mxu0 0.0
          %445 = vmatprep.subr.mxu0 0.0
          %446 = vmatpush2.msra.mxu0 0.0
          %447 = vmatprep.subr.mxu0 0.0
          %448 = vmatpush2.msra.mxu0 0.0
          %449 = vmatprep.subr.mxu0 0.0
          %450 = vmatpush2.msra.mxu0 0.0
          %451 = vmatprep.subr.mxu0 0.0
          %452 = vmatpush2.msra.mxu0 0.0
          %453 = vmatprep.subr.mxu0 0.0
          %454 = vmatpush2.msra.mxu0 0.0
          %455 = vmatprep.subr.mxu0 0.0
          %456 = vmatpush2.msra.mxu0 0.0
          %457 = vmatprep.subr.mxu0 0.0
          %458 = vmatpush2.msra.mxu0 0.0
          %459 = vmatprep.mubr.f32.mxu0 0.0
          %460 = vmatmul.mubr.f32.gmra.mxu0 %v383
          %v461 = vpop.f32.mrf.mxu0
          %v462 = vadd.f32 0.0, %v461
          %v463 = vpop.f32.mrf.mxu0
          %464 = vmatprep.mubr.f32.mxu0 0.0
          %465 = vmatmul.mubr.f32.gmra.mxu0 %v386
          %v466 = vpop.f32.mrf.mxu0
          %v467 = vadd.f32 0.0, %v466
          %v468 = vpop.f32.mrf.mxu0
          %469 = vmatprep.mubr.f32.mxu0 0.0
          %470 = vmatmul.mubr.f32.gmra.mxu0 %v389
          %v471 = vpop.f32.mrf.mxu0
          %v472 = vadd.f32 0.0, %v471
          %v473 = vpop.f32.mrf.mxu0
          %474 = vdwg.mxu0
          %v475 = vmul.f32 %v462, %v467
          %v476 = vmul.f32 %v475, %v472
          %v477 = vrot.slane %v476, 4
          %v478 = vadd.f32 %v476, %v477
          %v479 = vrot.slane %v478, 2
          %v480 = vadd.f32 %v478, %v479
          %v481 = vrot.slane %v480, 1
          %v482 = vadd.f32 %v480, %v481
          %v483 = vmax.f32 %v482, 1e-10
          %v484 = vlog2.pop %v483
          %v485 = vmul.f32 %v484, 0.6931472
          %v486 = vmul.f32 %v313, %v485
          %v488 = vrot.slane %v486, 3
          %vm490 = vcmask 1040384
          %v491 = vsel %vm490, %v488, 0.0
          %492 = vadd.xlane.f32.xlu0 %v491
          %v493 = vpop.xlane.xlu0 %492
          %v494 = vrot.slane %v493, 4
          %v495 = vadd.f32 %v493, %v494
          %v496 = vrot.slane %v495, 2
          %v497 = vadd.f32 %v495, %v496
          %v498 = vrot.slane %v497, 1
          %v499 = vadd.f32 %v497, %v498
          %s500 = vtos %v499
          %v501 = vld [vmem:[%s299] sm:$0x1]
          %s502 = sld [smem:[#allocation4 + %s22]]
          %s503 = smul.f32 %s500, %s502
          %v504 = vstv %s503
          %v505 = vadd.f32 %v501, %v504
          %vm506 = vcmask 0
          %507 = vst.msk [vmem:[%s299] sm:$0x1] %vm506, %v505
        $region60: #{_cntf_forward_impl.1} parent=39 // pred_fallthru
          _
        %p508 = scmp.lt.s32.totalorder %s22, 1
        %s509 = scalar_select %p508, %s22, 1
        %s510 = scalar_lea.vmem %s5, %s509
        // Predicated region
        $region61: #{_cntf_forward_impl.1} parent=39 // pred_check
          %p511 = pneg %p165
        $region62: #{_cntf_forward_impl.1} parent=39 // pred_check_branch
          %513 = sbr.rel (%p511) target = $region64
        $region63: #{_cntf_forward_impl.1} parent=39 // pred_region
          _
        $region64: #{_cntf_forward_impl.1} parent=39 // pred_fallthru
          _
      $region40: #{_cntf_forward_impl.1} parent=5 // pred_fallthru
        _
      %p514 = scmp.le.s32.totalorder 2, %s13
      // Predicated region
      $region65: #{_cntf_forward_impl.1} parent=5 // pred_check
        %p515 = pneg %p514
      $region66: #{_cntf_forward_impl.1} parent=5 // pred_check_branch
        %517 = sbr.rel (%p515) target = $region68
      $region67: #{_cntf_forward_impl.1} parent=5 // pred_region
        %s518 = ssub.s32 %s13, 2
        // Predicated region
        $region69: #{_cntf_forward_impl.1} parent=67 // pred_check
          %p519 = pneg %p171
        $region70: #{_cntf_forward_impl.1} parent=67 // pred_check_branch
          %521 = sbr.rel (%p519) target = $region72
        $region71: #{_cntf_forward_impl.1} parent=67 // pred_region
          %p522 = scmp.lt.s32.totalorder %s24, 1
          %s523 = scalar_select %p522, %s24, 1
          %s524 = scalar_lea.vmem %s5, %s523
        $region72: #{_cntf_forward_impl.1} parent=67 // pred_fallthru
          _
      $region68: #{_cntf_forward_impl.1} parent=5 // pred_fallthru
        _
    $region6: #{_cntf_forward_impl.1} parent=1 // loop_footer
      %s17 = sadd.s32 1, %s13
    $region7: #{_cntf_forward_impl.1} parent=1 // loop_footer_branch
      %12 = sbr.rel target = $region3
    $region8: #{_cntf_forward_impl.1} parent=1 // loop_exit
      _
    %525 = vsyncpa [#allocation3], 1
    %s526 = scalar_lea.sflag [#allocation3], 1
    %527 = vsyncpa %s526, 1
    %528 = vsyncpa [#allocation5], 1

</llo_original>
